<compile_context>
chip_gen: v7x
topology: tpu7x:2x2x1
jax: 0.10.0
libtpu: 0.0.40
codegen_flags: <defaults>
</compile_context>

<pallas_src>
import functools

import jax
import jax.numpy as jnp
from jax.experimental import pallas as pl
from jax.experimental.pallas import tpu as pltpu


def _attn_kernel(x_ref, key_ref, value_ref, drop_ref, inv_scale_ref, o_ref,
                 *, d_valid, d_pad):
    x = x_ref[...]                       # (tile_n, d_pad) f32
    k = key_ref[...]                     # (d_pad, d_pad)  bf16 (resident)
    v = value_ref[...]                   # (d_pad, d_pad)  bf16 (resident)

    # qk = x1 @ key : bf16 operands on the MXU, f32 accumulation.
    qk = jnp.dot(x.astype(jnp.bfloat16), k, preferred_element_type=jnp.float32)

    # scaled_qk = qk * inv_scale_factor ** (-1)
    scaled = qk * (1.0 / inv_scale_ref[0])

    # Mask padded logit columns so they do not contribute to the softmax.
    if d_valid != d_pad:                 # static Python branch (trace-time)
        col = jax.lax.broadcasted_iota(jnp.int32, scaled.shape, 1)
        scaled = jnp.where(col < d_valid, scaled, -jnp.inf)

    # Numerically-stable softmax over the last dim (divide only the row sums).
    m = jnp.max(scaled, axis=-1, keepdims=True)
    e = jnp.exp(scaled - m)
    p = e * (1.0 / jnp.sum(e, axis=-1, keepdims=True))

    # Dropout: multiply by the precomputed {0, 1/(1-p)} multiplier tile.
    p = p * drop_ref[...].astype(jnp.float32)

    # output = softmax_qk @ value : bf16 operands, f32 accumulation.
    o_ref[...] = jnp.dot(p.astype(jnp.bfloat16), v,
                         preferred_element_type=jnp.float32).astype(o_ref.dtype)


def init_params(rng, input_size, output_size, query_size):
    """Deterministic parameter init mirroring the torch module's __init__."""
    k1, k2, k3 = jax.random.split(rng, 3)
    std = input_size ** (-0.5)
    return {
        "key": std * jax.random.normal(k1, (output_size, input_size), jnp.float32),
        "query": std * jax.random.normal(k2, (output_size, query_size), jnp.float32),
        "value": std * jax.random.normal(k3, (output_size, input_size), jnp.float32),
        "inv_scale_factor": jnp.ones((1,), jnp.float32),
    }


def model_forward(x1, x2, params, *, dropout_p=0.5, rng=None, tile_n=256):
    del x2  # unused by the reference forward

    key_w = params["key"].astype(jnp.float32)
    value_w = params["value"].astype(jnp.float32)
    inv_scale = params["inv_scale_factor"].reshape((1,)).astype(jnp.float32)

    n, d_feat = x1.shape
    d_out, d_in = key_w.shape
    assert d_feat == d_out, "x1 feature dim must equal output_size"
    assert d_in == d_out, "second tensordot requires input_size == output_size"
    d = d_in

    # Lane-dense feature dim (multiple of 128) and 8/256-aligned row tiles.
    dp = max(128, ((d + 127) // 128) * 128)
    tile_n = int(min(tile_n, max(8, ((n + 7) // 8) * 8)))
    num_tiles = int(pl.cdiv(n, tile_n))
    n_pad = num_tiles * tile_n

    # Pad inputs / weights (zeros in padded cols -> exact zeros downstream).
    x_pad = jnp.pad(x1, ((0, n_pad - n), (0, dp - d)))            # f32, cast in-kernel
    key_pad = jnp.pad(key_w, ((0, dp - d), (0, dp - d))).astype(jnp.bfloat16)
    value_pad = jnp.pad(value_w, ((0, dp - d), (0, dp - d))).astype(jnp.bfloat16)

    # Host-side dropout multiplier: 0 w.p. p, 1/(1-p) w.p. (1-p).
    if rng is None:
        rng = jax.random.PRNGKey(0)
    if dropout_p > 0.0:
        keep = jax.random.bernoulli(rng, 1.0 - dropout_p, (n_pad, dp))
        drop_mult = keep.astype(jnp.bfloat16) * jnp.asarray(
            1.0 / (1.0 - dropout_p), jnp.bfloat16)
    else:
        drop_mult = jnp.ones((n_pad, dp), jnp.bfloat16)

    kernel = functools.partial(_attn_kernel, d_valid=d, d_pad=dp)

    # Scheduler hint: two matmuls + one exp per output element.
    cost = pl.CostEstimate(
        flops=2 * 2 * n_pad * dp * dp,
        transcendentals=n_pad * dp,
        bytes_accessed=(x_pad.size * 4 + key_pad.size * 2 + value_pad.size * 2
                        + drop_mult.size * 2 + n_pad * dp * 4 + 4),
    )

    # VMEM budget: double-buffered x/mask/out tiles + resident bf16 weights,
    # with generous headroom, capped under the v7x 32 MiB scoped default.
    per_step = 2 * (tile_n * dp * 4 + tile_n * dp * 2 + tile_n * dp * 4) \
        + 2 * 2 * (dp * dp * 2)
    vmem_limit = int(min(32 * 1024 * 1024, max(4 * 1024 * 1024, 4 * per_step)))

    out_pad = pl.pallas_call(
        kernel,
        out_shape=jax.ShapeDtypeStruct((n_pad, dp), jnp.float32),
        grid=(num_tiles,),
        in_specs=[
            pl.BlockSpec((tile_n, dp), lambda i: (i, 0)),        # x rows (pipelined)
            pl.BlockSpec((dp, dp), lambda i: (0, 0)),            # key  (resident)
            pl.BlockSpec((dp, dp), lambda i: (0, 0)),            # value (resident)
            pl.BlockSpec((tile_n, dp), lambda i: (i, 0)),        # dropout multiplier
            pl.BlockSpec(memory_space=pltpu.MemorySpace.SMEM),   # inv_scale_factor
        ],
        out_specs=pl.BlockSpec((tile_n, dp), lambda i: (i, 0)),
        compiler_params=pltpu.CompilerParams(
            dimension_semantics=("parallel",),
            vmem_limit_bytes=vmem_limit),
        cost_estimate=cost,
    )(x_pad, key_pad, value_pad, drop_mult, inv_scale)

    return out_pad[:n, :d]


if __name__ == "__main__":
    # Small but hardware-friendly shapes: forward requires
    # input_size == output_size; 128-wide features are already lane-dense and
    # batch=512 gives a 2-step "parallel" grid with 256-row tiles.
    input_size = 128
    output_size = 128
    query_size = 32
    batch = 512
    dropout_p = 0.5

    root = jax.random.PRNGKey(0)
    p_rng, x1_rng, x2_rng, drop_rng = jax.random.split(root, 4)

    params = init_params(p_rng, input_size, output_size, query_size)
    x1 = jax.random.normal(x1_rng, (batch, output_size), jnp.float32)
    x2 = jax.random.normal(x2_rng, (batch, query_size), jnp.float32)  # unused

    out = model_forward(x1, x2, params, dropout_p=dropout_p, rng=drop_rng)
    jax.block_until_ready(out)

    assert out.shape == (batch, input_size) and out.dtype == jnp.float32
    assert bool(jnp.all(jnp.isfinite(out)))

    # Pure-JAX reference with the identical dropout mask (shapes here need no
    # padding, so the mask draw matches the one inside model_forward exactly).
    keep = jax.random.bernoulli(drop_rng, 1.0 - dropout_p, (batch, input_size))
    mask = keep.astype(jnp.float32) / (1.0 - dropout_p)
    qk = x1 @ params["key"]
    sm = jax.nn.softmax(qk * (1.0 / params["inv_scale_factor"][0]), axis=-1)
    ref = (sm * mask) @ params["value"]
    assert bool(jnp.allclose(out, ref, rtol=2e-2, atol=2e-2)), "mismatch vs reference"

    print("KERNEL_OK")
</pallas_src>

<mosaic_0001>
module attributes {stable_mosaic.version = 11 : i64} {
  func.func @_attn_kernel(%arg0: i32, %arg1: memref<256x128xf32, #tpu.memory_space<vmem>>, %arg2: memref<128x128xbf16, #tpu.memory_space<vmem>>, %arg3: memref<128x128xbf16, #tpu.memory_space<vmem>>, %arg4: memref<256x128xbf16, #tpu.memory_space<vmem>>, %arg5: memref<1xf32, #tpu.memory_space<smem>>, %arg6: memref<256x128xf32, #tpu.memory_space<vmem>>) attributes {dimension_semantics = [#tpu.dimension_semantics<parallel>], iteration_bounds = array<i64: 2>, scalar_prefetch = 0 : i64, scratch_operands = 0 : i64, tpu.core_type = #tpu.core_type<tc>, window_params = [{transform_indices = @transform_0, window_bounds = array<i64: 256, 128>}, {pipeline_mode = #tpu.pipeline_mode<synchronous>, transform_indices = @transform_1, window_bounds = array<i64: 128, 128>}, {pipeline_mode = #tpu.pipeline_mode<synchronous>, transform_indices = @transform_2, window_bounds = array<i64: 128, 128>}, {transform_indices = @transform_3, window_bounds = array<i64: 256, 128>}, {transform_indices = @transform_4, window_bounds = array<i64: 1>}, {transform_indices = @transform_5, window_bounds = array<i64: 256, 128>}]} {
    %c0 = arith.constant 0 : index
    %c0_0 = arith.constant 0 : index
    %0 = vector.load %arg1[%c0, %c0_0] : memref<256x128xf32, #tpu.memory_space<vmem>>, vector<256x128xf32>
    %c0_1 = arith.constant 0 : index
    %c0_2 = arith.constant 0 : index
    %1 = vector.load %arg2[%c0_1, %c0_2] : memref<128x128xbf16, #tpu.memory_space<vmem>>, vector<128x128xbf16>
    %c0_3 = arith.constant 0 : index
    %c0_4 = arith.constant 0 : index
    %2 = vector.load %arg3[%c0_3, %c0_4] : memref<128x128xbf16, #tpu.memory_space<vmem>>, vector<128x128xbf16>
    %3 = arith.truncf %0 : vector<256x128xf32> to vector<256x128xbf16>
    %cst = arith.constant dense<0.000000e+00> : vector<256x128xf32>
    %4 = tpu.matmul %3, %1, %cst {dimension_numbers = #tpu.dot_dimension_numbers<[1], [0], [0], [1], [0, 0, 1, 1], [], []>} : vector<256x128xbf16>, vector<128x128xbf16>, vector<256x128xf32> -> vector<256x128xf32>
    %c0_5 = arith.constant 0 : index
    %5 = memref.load %arg5[%c0_5] : memref<1xf32, #tpu.memory_space<smem>>
    %cst_6 = arith.constant 1.000000e+00 : f32
    %6 = arith.divf %cst_6, %5 : f32
    %7 = vector.broadcast %6 : f32 to vector<256x128xf32>
    %8 = arith.mulf %4, %7 : vector<256x128xf32>
    %cst_7 = arith.constant dense<0xFF800000> : vector<256xf32>
    %9 = vector.multi_reduction <maximumf>, %8, %cst_7 [1] : vector<256x128xf32> to vector<256xf32>
    %10 = vector.shape_cast %9 : vector<256xf32> to vector<256x1xf32>
    %11 = vector.broadcast %10 : vector<256x1xf32> to vector<256x128xf32>
    %12 = arith.subf %8, %11 : vector<256x128xf32>
    %13 = math.exp %12 : vector<256x128xf32>
    %cst_8 = arith.constant dense<0.000000e+00> : vector<256xf32>
    %14 = vector.multi_reduction <add>, %13, %cst_8 [1] : vector<256x128xf32> to vector<256xf32>
    %15 = vector.shape_cast %14 : vector<256xf32> to vector<256x1xf32>
    %cst_9 = arith.constant 1.000000e+00 : f32
    %16 = vector.broadcast %cst_9 : f32 to vector<256x1xf32>
    %17 = arith.divf %16, %15 : vector<256x1xf32>
    %18 = vector.broadcast %17 : vector<256x1xf32> to vector<256x128xf32>
    %19 = arith.mulf %13, %18 : vector<256x128xf32>
    %c0_10 = arith.constant 0 : index
    %c0_11 = arith.constant 0 : index
    %20 = vector.load %arg4[%c0_10, %c0_11] : memref<256x128xbf16, #tpu.memory_space<vmem>>, vector<256x128xbf16>
    %21 = arith.extf %20 : vector<256x128xbf16> to vector<256x128xf32>
    %22 = arith.mulf %19, %21 : vector<256x128xf32>
    %23 = arith.truncf %22 : vector<256x128xf32> to vector<256x128xbf16>
    %cst_12 = arith.constant dense<0.000000e+00> : vector<256x128xf32>
    %24 = tpu.matmul %23, %2, %cst_12 {dimension_numbers = #tpu.dot_dimension_numbers<[1], [0], [0], [1], [0, 0, 1, 1], [], []>} : vector<256x128xbf16>, vector<128x128xbf16>, vector<256x128xf32> -> vector<256x128xf32>
    %c0_13 = arith.constant 0 : index
    %c0_14 = arith.constant 0 : index
    %25 = vector.load %arg6[%c0_13, %c0_14] : memref<256x128xf32, #tpu.memory_space<vmem>>, vector<256x128xf32>
    tpu.vector_store %arg6[%c0_13, %c0_14], %24 {strides = array<i32>} : memref<256x128xf32, #tpu.memory_space<vmem>>, vector<256x128xf32>,
    return
  }
  func.func @transform_0(%arg0: i32) -> (i32, i32) {
    %c0_i32 = arith.constant 0 : i32
    %c0_i32_0 = arith.constant 0 : i32
    return %arg0, %c0_i32 : i32, i32
  }
  func.func @transform_1(%arg0: i32) -> (i32, i32) {
    %c0_i32 = arith.constant 0 : i32
    %c0_i32_0 = arith.constant 0 : i32
    %c0_i32_1 = arith.constant 0 : i32
    return %c0_i32, %c0_i32_0 : i32, i32
  }
  func.func @transform_2(%arg0: i32) -> (i32, i32) {
    %c0_i32 = arith.constant 0 : i32
    %c0_i32_0 = arith.constant 0 : i32
    %c0_i32_1 = arith.constant 0 : i32
    return %c0_i32, %c0_i32_0 : i32, i32
  }
  func.func @transform_3(%arg0: i32) -> (i32, i32) {
    %c0_i32 = arith.constant 0 : i32
    %c0_i32_0 = arith.constant 0 : i32
    return %arg0, %c0_i32 : i32, i32
  }
  func.func @transform_4(%arg0: i32) -> i32 {
    %c0_i32 = arith.constant 0 : i32
    %c0_i32_0 = arith.constant 0 : i32
    return %c0_i32 : i32
  }
  func.func @transform_5(%arg0: i32) -> (i32, i32) {
    %c0_i32 = arith.constant 0 : i32
    %c0_i32_0 = arith.constant 0 : i32
    return %arg0, %c0_i32 : i32, i32
  }
}

</mosaic_0001>

<llo_original>
// kernel: tpu_custom_call.1
$region0: #{tpu_custom_call.1}
  #allocation0 [shape = 'u32[]', space=smem, size = 0x4, offset = 0x4, fixed_abs, tag = 'smem constant byte address 0x4 - core index']
  #allocation1 [shape = 'u32[144,128]{1,0:T(1,128)}', space=vmem, size = 0x12000, scoped, tag = 'internal scratch']
  #allocation2 [shape = 'f32[1]{0:T(128)S(6)}', space=smem, size = 0x200, scoped, tag = 'scoped memory for tpu_custom_call.1']
  %s0 = inlined_call_operand.hbm [shape: f32[512,128], index: 0, kind: input, shape index: {}]
  %s1 = inlined_call_operand.hbm [shape: bf16[128,128], index: 1, kind: input, shape index: {}]
  %s2 = inlined_call_operand.hbm [shape: bf16[128,128], index: 2, kind: input, shape index: {}]
  %s3 = inlined_call_operand.hbm [shape: bf16[512,128], index: 3, kind: input, shape index: {}]
  %s4 = inlined_call_operand.<no memory space> [shape: f32[1], index: 4, kind: input, shape index: {}]
  %s5 = inlined_call_operand.hbm [shape: f32[512,128], index: 5, kind: output, shape index: {}]
  %s6 = sld [smem:[#allocation0]]
  $region69: #{tpu_custom_call.1} parent=0
    _
  %s8 = ssub.s32 1, %s6
  %s9 = scalar_select 0, %s8, %s6
  %10 = sst [smem:[#allocation2]] %s4
  $region1: #{tpu_custom_call.1} parent=0
    #allocation3 [shape = 'u8[262144]{0}', space=vmem, size = 0x40000, scoped, tag = 'input window, operand 0']
    #allocation4 [shape = 's32[2]{0}', space=sflag, size = 0x8, scoped, tag = 'scoped memory for tpu_custom_call.1']
    #allocation5 [shape = 's32[2]{0}', space=sflag, size = 0x8, scoped, tag = 'scoped memory for tpu_custom_call.1']
    #allocation6 [shape = 'u8[32768]{0}', space=vmem, size = 0x8000, scoped, tag = 'input window, operand 1, single buffered']
    #allocation7 [shape = 's32[1]{0}', space=sflag, size = 0x4, scoped, tag = 'scoped memory for tpu_custom_call.1']
    #allocation8 [shape = 'u8[32768]{0}', space=vmem, size = 0x8000, scoped, tag = 'input window, operand 2, single buffered']
    #allocation9 [shape = 'u8[131072]{0}', space=vmem, size = 0x20000, scoped, tag = 'input window, operand 3']
    #allocation10 [shape = 's32[2]{0}', space=sflag, size = 0x8, scoped, tag = 'scoped memory for tpu_custom_call.1']
    #allocation11 [shape = 'u8[262144]{0}', space=vmem, size = 0x40000, scoped, tag = 'output window, operand 0']
    %11 = vsyncpa [#allocation4], 0
    %s12 = scalar_lea.sflag [#allocation4], 1
    %13 = vsyncpa %s12, 0
    %14 = vsyncpa [#allocation7], 0
    %15 = vsyncpa [#allocation10], 0
    %s16 = scalar_lea.sflag [#allocation10], 1
    %17 = vsyncpa %s16, 0
    %18 = vsyncpa [#allocation5], 0
    %s19 = scalar_lea.sflag [#allocation5], 1
    %20 = vsyncpa %s19, 0
    loop: start=0, step=1, limit=4
    $region2: #{tpu_custom_call.1} parent=1 // loop_pre_header
      _
    $region3: #{tpu_custom_call.1} parent=1 // loop_header
      %s22 = sphi 0, %s26
      %p23 = scmp.ge.s32.totalorder %s22, 4
      %s32 = sphi 0, %s34
      %s35 = sphi 0, %s32
      %s36 = sphi 0, %s35
      %s52 = sphi 0, %s36
      %s56 = sphi 0, %s56
      %s58 = sphi 0, %s56
      %s59 = sphi 0, %s58
      %s73 = sphi 0, %s59
      %s77 = sphi 0, %s77
      %s79 = sphi 0, %s77
      %s80 = sphi 0, %s79
      %s94 = sphi 0, %s80
      %s100 = sphi 0, %s102
      %s103 = sphi 0, %s100
      %s104 = sphi 0, %s103
      %s120 = sphi 0, %s104
      %s124 = sphi 0, %s124
      %s126 = sphi 0, %s124
      %s127 = sphi 0, %s126
      %s141 = sphi 0, %s127
      %s147 = sphi 0, %s149
      %s150 = sphi 0, %s147
      %s151 = sphi 0, %s150
      %s167 = sphi 0, %s151
    $region4: #{tpu_custom_call.1} parent=1 // loop_header_branch
      %25 = sbr.rel (%p23) target = $region8
    $region5: #{tpu_custom_call.1} parent=1 // loop_body
      %s27 = ssub.s32 %s22, 1
      %s28 = ssub.s32 %s22, 2
      %s29 = sadd.s32 %s22, 1
      %s30 = ssub.s32 %s22, %s29
      %p31 = scmp.eq.s32.totalorder %s30, 0
      %s33 = sadd.s32 %s32, 1
      %s34 = scalar_select %p31, %s32, %s33
      %p37 = pneg %p31
      %p38 = scmp.eq.s32.totalorder %s22, 1
      %p39 = por %p37, %p38
      %p40 = scmp.ne.s32.totalorder %s32, %s35
      %p41 = scmp.eq.s32.totalorder %s22, 0
      %p42 = por %p40, %p41
      %p43 = scmp.ne.s32.totalorder %s32, %s35
      %p44 = scmp.eq.s32.totalorder %s27, 1
      %p45 = por %p43, %p44
      %p46 = scmp.ne.s32.totalorder %s35, %s36
      %p47 = scmp.eq.s32.totalorder %s27, 0
      %p48 = por %p46, %p47
      %p49 = scmp.ne.s32.totalorder %s35, %s36
      %p50 = scmp.eq.s32.totalorder %s28, 1
      %p51 = por %p49, %p50
      %p53 = scmp.ne.s32.totalorder %s36, %s52
      %p54 = scmp.eq.s32.totalorder %s28, 0
      %p55 = por %p53, %p54
      %s57 = sadd.s32 %s56, 1
      %p60 = scmp.eq.s32.totalorder %s22, 1
      %p61 = scmp.ne.s32.totalorder %s56, %s58
      %p62 = scmp.eq.s32.totalorder %s22, 0
      %p63 = por %p61, %p62
      %p64 = scmp.ne.s32.totalorder %s56, %s58
      %p65 = scmp.eq.s32.totalorder %s27, 1
      %p66 = por %p64, %p65
      %p67 = scmp.ne.s32.totalorder %s58, %s59
      %p68 = scmp.eq.s32.totalorder %s27, 0
      %p69 = por %p67, %p68
      %p70 = scmp.ne.s32.totalorder %s58, %s59
      %p71 = scmp.eq.s32.totalorder %s28, 1
      %p72 = por %p70, %p71
      %p74 = scmp.ne.s32.totalorder %s59, %s73
      %p75 = scmp.eq.s32.totalorder %s28, 0
      %p76 = por %p74, %p75
      %s78 = sadd.s32 %s77, 1
      %p81 = scmp.eq.s32.totalorder %s22, 1
      %p82 = scmp.ne.s32.totalorder %s77, %s79
      %p83 = scmp.eq.s32.totalorder %s22, 0
      %p84 = por %p82, %p83
      %p85 = scmp.ne.s32.totalorder %s77, %s79
      %p86 = scmp.eq.s32.totalorder %s27, 1
      %p87 = por %p85, %p86
      %p88 = scmp.ne.s32.totalorder %s79, %s80
      %p89 = scmp.eq.s32.totalorder %s27, 0
      %p90 = por %p88, %p89
      %p91 = scmp.ne.s32.totalorder %s79, %s80
      %p92 = scmp.eq.s32.totalorder %s28, 1
      %p93 = por %p91, %p92
      %p95 = scmp.ne.s32.totalorder %s80, %s94
      %p96 = scmp.eq.s32.totalorder %s28, 0
      %p97 = por %p95, %p96
      %s98 = ssub.s32 %s22, %s29
      %p99 = scmp.eq.s32.totalorder %s98, 0
      %s101 = sadd.s32 %s100, 1
      %s102 = scalar_select %p99, %s100, %s101
      %p105 = pneg %p99
      %p106 = scmp.eq.s32.totalorder %s22, 1
      %p107 = por %p105, %p106
      %p108 = scmp.ne.s32.totalorder %s100, %s103
      %p109 = scmp.eq.s32.totalorder %s22, 0
      %p110 = por %p108, %p109
      %p111 = scmp.ne.s32.totalorder %s100, %s103
      %p112 = scmp.eq.s32.totalorder %s27, 1
      %p113 = por %p111, %p112
      %p114 = scmp.ne.s32.totalorder %s103, %s104
      %p115 = scmp.eq.s32.totalorder %s27, 0
      %p116 = por %p114, %p115
      %p117 = scmp.ne.s32.totalorder %s103, %s104
      %p118 = scmp.eq.s32.totalorder %s28, 1
      %p119 = por %p117, %p118
      %p121 = scmp.ne.s32.totalorder %s104, %s120
      %p122 = scmp.eq.s32.totalorder %s28, 0
      %p123 = por %p121, %p122
      %s125 = sadd.s32 %s124, 1
      %p128 = scmp.eq.s32.totalorder %s22, 1
      %p129 = scmp.ne.s32.totalorder %s124, %s126
      %p130 = scmp.eq.s32.totalorder %s22, 0
      %p131 = por %p129, %p130
      %p132 = scmp.ne.s32.totalorder %s124, %s126
      %p133 = scmp.eq.s32.totalorder %s27, 1
      %p134 = por %p132, %p133
      %p135 = scmp.ne.s32.totalorder %s126, %s127
      %p136 = scmp.eq.s32.totalorder %s27, 0
      %p137 = por %p135, %p136
      %p138 = scmp.ne.s32.totalorder %s126, %s127
      %p139 = scmp.eq.s32.totalorder %s28, 1
      %p140 = por %p138, %p139
      %p142 = scmp.ne.s32.totalorder %s127, %s141
      %p143 = scmp.eq.s32.totalorder %s28, 0
      %p144 = por %p142, %p143
      %s145 = ssub.s32 %s22, %s29
      %p146 = scmp.eq.s32.totalorder %s145, 0
      %s148 = sadd.s32 %s147, 1
      %s149 = scalar_select %p146, %s147, %s148
      %p152 = pneg %p146
      %p153 = scmp.eq.s32.totalorder %s22, 1
      %p154 = por %p152, %p153
      %p155 = scmp.ne.s32.totalorder %s147, %s150
      %p156 = scmp.eq.s32.totalorder %s22, 0
      %p157 = por %p155, %p156
      %p158 = scmp.ne.s32.totalorder %s147, %s150
      %p159 = scmp.eq.s32.totalorder %s27, 1
      %p160 = por %p158, %p159
      %p161 = scmp.ne.s32.totalorder %s150, %s151
      %p162 = scmp.eq.s32.totalorder %s27, 0
      %p163 = por %p161, %p162
      %p164 = scmp.ne.s32.totalorder %s150, %s151
      %p165 = scmp.eq.s32.totalorder %s28, 1
      %p166 = por %p164, %p165
      %p168 = scmp.ne.s32.totalorder %s151, %s167
      %p169 = scmp.eq.s32.totalorder %s28, 0
      %p170 = por %p168, %p169
      %p171 = scmp.le.s32.totalorder 1, %s22
      %p172 = scmp.lt.s32.totalorder %s22, 3
      %p173 = pnand %p171, %p172
      %p174 = pneg %p173
      // Predicated region
      $region9: #{tpu_custom_call.1} parent=5 // pred_check
        _
      $region10: #{tpu_custom_call.1} parent=5 // pred_check_branch
        %176 = sbr.rel (%p173) target = $region12
      $region11: #{tpu_custom_call.1} parent=5 // pred_region
        %s177 = ssub.s32 %s22, 1
        // Predicated region
        $region13: #{tpu_custom_call.1} parent=11 // pred_check
          %p178 = pneg %p69
        $region14: #{tpu_custom_call.1} parent=11 // pred_check_branch
          %180 = sbr.rel (%p178) target = $region16
        $region15: #{tpu_custom_call.1} parent=11 // pred_region
          %s182 = ssub.s32 1024, 1024
          %183 = vsyncadd [#allocation7], %s182
          %s184 = sshll.u32 [#allocation6], 4
          %s185 = int_to_ptr.vmem [resolvable:$true] %s184
          %190 = dma.hbm_to_vmem [thread:$0]  %s1, 1024, %s185, [#allocation7], 64, 64, 4
        $region16: #{tpu_custom_call.1} parent=11 // pred_fallthru
          _
        // Predicated region
        $region17: #{tpu_custom_call.1} parent=11 // pred_check
          %p191 = pneg %p90
        $region18: #{tpu_custom_call.1} parent=11 // pred_check_branch
          %193 = sbr.rel (%p191) target = $region20
        $region19: #{tpu_custom_call.1} parent=11 // pred_region
          %s195 = ssub.s32 1024, 1024
          %196 = vsyncadd [#allocation7], %s195
          %s197 = sshll.u32 [#allocation8], 4
          %s198 = int_to_ptr.vmem [resolvable:$true] %s197
          %203 = dma.hbm_to_vmem [thread:$0]  %s2, 1024, %s198, [#allocation7], 64, 64, 4
        $region20: #{tpu_custom_call.1} parent=11 // pred_fallthru
          _
        // Predicated region
        $region21: #{tpu_custom_call.1} parent=11 // pred_check
          %p204 = pneg %p137
        $region22: #{tpu_custom_call.1} parent=11 // pred_check_branch
          %206 = sbr.rel (%p204) target = $region24
        $region23: #{tpu_custom_call.1} parent=11 // pred_region
          _
        $region24: #{tpu_custom_call.1} parent=11 // pred_fallthru
          _
      $region12: #{tpu_custom_call.1} parent=5 // pred_fallthru
        _
      %p207 = scmp.lt.s32.totalorder %s22, 2
      // Predicated region
      $region25: #{tpu_custom_call.1} parent=5 // pred_check
        %p208 = pneg %p207
      $region26: #{tpu_custom_call.1} parent=5 // pred_check_branch
        %210 = sbr.rel (%p208) target = $region28
      $region27: #{tpu_custom_call.1} parent=5 // pred_region
        // Predicated region
        $region29: #{tpu_custom_call.1} parent=27 // pred_check
          %p211 = pneg %p42
        $region30: #{tpu_custom_call.1} parent=27 // pred_check_branch
          %213 = sbr.rel (%p211) target = $region32
        $region31: #{tpu_custom_call.1} parent=27 // pred_region
          %s214 = sand.u32 %s32, 1
          %s215 = scalar_lea.sflag [#allocation4], %s214
          %s216 = sand.u32 %s32, 1
          %s217 = smul.addr %s216, 256
          %s218 = scalar_lea.vmem [#allocation3], %s217
          %s219 = smul.u32 32, %s22
          %s221 = ssub.s32 4096, 4096
          %222 = vsyncadd %s215, %s221
          %s223 = smul.addr %s219, 128
          %s224 = scalar_lea.hbm %s0, %s223
          %s225 = sshll.u32 %s218, 4
          %s226 = int_to_ptr.vmem [resolvable:$true] %s225
          %231 = dma.hbm_to_vmem [thread:$0]  %s224, 4096, %s226, %s215, 128, 128, 8
        $region32: #{tpu_custom_call.1} parent=27 // pred_fallthru
          _
        // Predicated region
        $region33: #{tpu_custom_call.1} parent=27 // pred_check
          %p232 = pneg %p110
        $region34: #{tpu_custom_call.1} parent=27 // pred_check_branch
          %234 = sbr.rel (%p232) target = $region36
        $region35: #{tpu_custom_call.1} parent=27 // pred_region
          %s235 = sand.u32 %s100, 1
          %s236 = scalar_lea.sflag [#allocation10], %s235
          %s237 = sand.u32 %s100, 1
          %s238 = smul.addr %s237, 128
          %s239 = scalar_lea.vmem [#allocation9], %s238
          %s240 = smul.u32 32, %s22
          %s242 = ssub.s32 2048, 2048
          %243 = vsyncadd %s236, %s242
          %s244 = smul.addr %s240, 64
          %s245 = scalar_lea.hbm %s3, %s244
          %s246 = sshll.u32 %s239, 4
          %s247 = int_to_ptr.vmem [resolvable:$true] %s246
          %252 = dma.hbm_to_vmem [thread:$0]  %s245, 2048, %s247, %s236, 64, 64, 4
        $region36: #{tpu_custom_call.1} parent=27 // pred_fallthru
          _
      $region28: #{tpu_custom_call.1} parent=5 // pred_fallthru
        _
      %p253 = scmp.le.s32.totalorder 1, %s22
      %p254 = scmp.lt.s32.totalorder %s22, 3
      %p255 = pnand %p253, %p254
      %p256 = pneg %p255
      // Predicated region
      $region37: #{tpu_custom_call.1} parent=5 // pred_check
        _
      $region38: #{tpu_custom_call.1} parent=5 // pred_check_branch
        %258 = sbr.rel (%p255) target = $region40
      $region39: #{tpu_custom_call.1} parent=5 // pred_region
        %s259 = ssub.s32 %s22, 1
        %s260 = sand.u32 %s35, 1
        %s261 = scalar_lea.sflag [#allocation4], %s260
        %s262 = sand.u32 %s35, 1
        %s263 = smul.addr %s262, 256
        %s264 = scalar_lea.vmem [#allocation3], %s263
        // Predicated region
        $region41: #{tpu_custom_call.1} parent=39 // pred_check
          %p265 = pneg %p48
        $region42: #{tpu_custom_call.1} parent=39 // pred_check_branch
          %267 = sbr.rel (%p265) target = $region44
        $region43: #{tpu_custom_call.1} parent=39 // pred_region
          %268 = dma.done %s261, 4096
        $region44: #{tpu_custom_call.1} parent=39 // pred_fallthru
          _
        // Predicated region
        $region45: #{tpu_custom_call.1} parent=39 // pred_check
          %p269 = pneg %p69
        $region46: #{tpu_custom_call.1} parent=39 // pred_check_branch
          %271 = sbr.rel (%p269) target = $region48
        $region47: #{tpu_custom_call.1} parent=39 // pred_region
          %272 = dma.done [#allocation7], 1024
        $region48: #{tpu_custom_call.1} parent=39 // pred_fallthru
          _
        // Predicated region
        $region49: #{tpu_custom_call.1} parent=39 // pred_check
          %p273 = pneg %p90
        $region50: #{tpu_custom_call.1} parent=39 // pred_check_branch
          %275 = sbr.rel (%p273) target = $region52
        $region51: #{tpu_custom_call.1} parent=39 // pred_region
          %276 = dma.done [#allocation7], 1024
        $region52: #{tpu_custom_call.1} parent=39 // pred_fallthru
          _
        %s277 = sand.u32 %s103, 1
        %s278 = scalar_lea.sflag [#allocation10], %s277
        %s279 = sand.u32 %s103, 1
        %s280 = smul.addr %s279, 128
        %s281 = scalar_lea.vmem [#allocation9], %s280
        // Predicated region
        $region53: #{tpu_custom_call.1} parent=39 // pred_check
          %p282 = pneg %p116
        $region54: #{tpu_custom_call.1} parent=39 // pred_check_branch
          %284 = sbr.rel (%p282) target = $region56
        $region55: #{tpu_custom_call.1} parent=39 // pred_region
          %285 = dma.done %s278, 2048
        $region56: #{tpu_custom_call.1} parent=39 // pred_fallthru
          _
        %s286 = sand.u32 %s35, 1
        %s287 = scalar_lea.sflag [#allocation4], %s286
        %s288 = sand.u32 %s35, 1
        %s289 = smul.addr %s288, 256
        %s290 = scalar_lea.vmem [#allocation3], %s289
        %p291 = pneg %p48
        %p292 = pneg %p45
        %p293 = pneg %p69
        %p294 = pneg %p66
        %p295 = pneg %p90
        %p296 = pneg %p87
        %s297 = sand.u32 %s103, 1
        %s298 = scalar_lea.sflag [#allocation10], %s297
        %s299 = sand.u32 %s103, 1
        %s300 = smul.addr %s299, 128
        %s301 = scalar_lea.vmem [#allocation9], %s300
        %p302 = pneg %p116
        %p303 = pneg %p113
        %p304 = pneg %p137
        %p305 = pneg %p134
        %p306 = pneg %p163
        %p307 = pneg %p160
        %s308 = sand.u32 %s150, 1
        %s309 = scalar_lea.sflag [#allocation5], %s308
        %s310 = sand.u32 %s150, 1
        %s311 = smul.addr %s310, 256
        %s312 = scalar_lea.vmem [#allocation11], %s311
        %s313 = smul.u32 32, %s27
        %s314 = smul.u32 32, %s27
        %s315 = smul.u32 32, %s27
        %v317 = vld [vmem:[%s264] sm:$0xff]
        %v318 = vld [vmem:[%s264 + $0x8] sm:$0xff]
        %v319 = vld [vmem:[%s264 + $0x10] sm:$0xff]
        %v320 = vld [vmem:[%s264 + $0x18] sm:$0xff]
        %v321 = vld [vmem:[%s264 + $0x20] sm:$0xff]
        %v322 = vld [vmem:[%s264 + $0x28] sm:$0xff]
        %v323 = vld [vmem:[%s264 + $0x30] sm:$0xff]
        %v324 = vld [vmem:[%s264 + $0x38] sm:$0xff]
        %v325 = vld [vmem:[%s264 + $0x40] sm:$0xff]
        %v326 = vld [vmem:[%s264 + $0x48] sm:$0xff]
        %v327 = vld [vmem:[%s264 + $0x50] sm:$0xff]
        %v328 = vld [vmem:[%s264 + $0x58] sm:$0xff]
        %v329 = vld [vmem:[%s264 + $0x60] sm:$0xff]
        %v330 = vld [vmem:[%s264 + $0x68] sm:$0xff]
        %v331 = vld [vmem:[%s264 + $0x70] sm:$0xff]
        %v332 = vld [vmem:[%s264 + $0x78] sm:$0xff]
        %v333 = vld [vmem:[%s264 + $0x80] sm:$0xff]
        %v334 = vld [vmem:[%s264 + $0x88] sm:$0xff]
        %v335 = vld [vmem:[%s264 + $0x90] sm:$0xff]
        %v336 = vld [vmem:[%s264 + $0x98] sm:$0xff]
        %v337 = vld [vmem:[%s264 + $0xa0] sm:$0xff]
        %v338 = vld [vmem:[%s264 + $0xa8] sm:$0xff]
        %v339 = vld [vmem:[%s264 + $0xb0] sm:$0xff]
        %v340 = vld [vmem:[%s264 + $0xb8] sm:$0xff]
        %v341 = vld [vmem:[%s264 + $0xc0] sm:$0xff]
        %v342 = vld [vmem:[%s264 + $0xc8] sm:$0xff]
        %v343 = vld [vmem:[%s264 + $0xd0] sm:$0xff]
        %v344 = vld [vmem:[%s264 + $0xd8] sm:$0xff]
        %v345 = vld [vmem:[%s264 + $0xe0] sm:$0xff]
        %v346 = vld [vmem:[%s264 + $0xe8] sm:$0xff]
        %v347 = vld [vmem:[%s264 + $0xf0] sm:$0xff]
        %v348 = vld [vmem:[%s264 + $0xf8] sm:$0xff]
        %v349 = vld [vmem:[#allocation6] sm:$0xf]
        %v350 = vld [vmem:[#allocation6 + $0x4] sm:$0xf]
        %v351 = vld [vmem:[#allocation6 + $0x8] sm:$0xf]
        %v352 = vld [vmem:[#allocation6 + $0xc] sm:$0xf]
        %v353 = vld [vmem:[#allocation6 + $0x10] sm:$0xf]
        %v354 = vld [vmem:[#allocation6 + $0x14] sm:$0xf]
        %v355 = vld [vmem:[#allocation6 + $0x18] sm:$0xf]
        %v356 = vld [vmem:[#allocation6 + $0x1c] sm:$0xf]
        %v357 = vld [vmem:[#allocation6 + $0x20] sm:$0xf]
        %v358 = vld [vmem:[#allocation6 + $0x24] sm:$0xf]
        %v359 = vld [vmem:[#allocation6 + $0x28] sm:$0xf]
        %v360 = vld [vmem:[#allocation6 + $0x2c] sm:$0xf]
        %v361 = vld [vmem:[#allocation6 + $0x30] sm:$0xf]
        %v362 = vld [vmem:[#allocation6 + $0x34] sm:$0xf]
        %v363 = vld [vmem:[#allocation6 + $0x38] sm:$0xf]
        %v364 = vld [vmem:[#allocation6 + $0x3c] sm:$0xf]
        %v365 = vld [vmem:[#allocation8] sm:$0xf]
        %v366 = vld [vmem:[#allocation8 + $0x4] sm:$0xf]
        %v367 = vld [vmem:[#allocation8 + $0x8] sm:$0xf]
        %v368 = vld [vmem:[#allocation8 + $0xc] sm:$0xf]
        %v369 = vld [vmem:[#allocation8 + $0x10] sm:$0xf]
        %v370 = vld [vmem:[#allocation8 + $0x14] sm:$0xf]
        %v371 = vld [vmem:[#allocation8 + $0x18] sm:$0xf]
        %v372 = vld [vmem:[#allocation8 + $0x1c] sm:$0xf]
        %v373 = vld [vmem:[#allocation8 + $0x20] sm:$0xf]
        %v374 = vld [vmem:[#allocation8 + $0x24] sm:$0xf]
        %v375 = vld [vmem:[#allocation8 + $0x28] sm:$0xf]
        %v376 = vld [vmem:[#allocation8 + $0x2c] sm:$0xf]
        %v377 = vld [vmem:[#allocation8 + $0x30] sm:$0xf]
        %v378 = vld [vmem:[#allocation8 + $0x34] sm:$0xf]
        %v379 = vld [vmem:[#allocation8 + $0x38] sm:$0xf]
        %v380 = vld [vmem:[#allocation8 + $0x3c] sm:$0xf]
        %v381 = vpack.c.bf16 %v318, %v317
        %v382 = vpack.c.bf16 %v320, %v319
        %v383 = vpack.c.bf16 %v322, %v321
        %v384 = vpack.c.bf16 %v324, %v323
        %v385 = vpack.c.bf16 %v326, %v325
        %v386 = vpack.c.bf16 %v328, %v327
        %v387 = vpack.c.bf16 %v330, %v329
        %v388 = vpack.c.bf16 %v332, %v331
        %v389 = vpack.c.bf16 %v334, %v333
        %v390 = vpack.c.bf16 %v336, %v335
        %v391 = vpack.c.bf16 %v338, %v337
        %v392 = vpack.c.bf16 %v340, %v339
        %v393 = vpack.c.bf16 %v342, %v341
        %v394 = vpack.c.bf16 %v344, %v343
        %v395 = vpack.c.bf16 %v346, %v345
        %v396 = vpack.c.bf16 %v348, %v347
        %v413 = vunpack.c.l.b16 %v349
        %v414 = vunpack.c.l.b16 %v350
        %v415 = vunpack.c.l.b16 %v351
        %v416 = vunpack.c.l.b16 %v352
        %v417 = vunpack.c.l.b16 %v353
        %v418 = vunpack.c.l.b16 %v354
        %v419 = vunpack.c.l.b16 %v355
        %v420 = vunpack.c.l.b16 %v356
        %v421 = vunpack.c.l.b16 %v357
        %v422 = vunpack.c.l.b16 %v358
        %v423 = vunpack.c.l.b16 %v359
        %v424 = vunpack.c.l.b16 %v360
        %v425 = vunpack.c.l.b16 %v361
        %v426 = vunpack.c.l.b16 %v362
        %v427 = vunpack.c.l.b16 %v363
        %v428 = vunpack.c.l.b16 %v364
        %v429 = vpack.c.b16 %v414, %v413
        %v430 = vpack.c.b16 %v416, %v415
        %v431 = vpack.c.b16 %v418, %v417
        %v432 = vpack.c.b16 %v420, %v419
        %v433 = vpack.c.b16 %v422, %v421
        %v434 = vpack.c.b16 %v424, %v423
        %v435 = vpack.c.b16 %v426, %v425
        %v436 = vpack.c.b16 %v428, %v427
        %445 = vmatprep.subr.bf16.mxu0 0
        %446 = vmatpush1.bf16.msra.mxu0 %v429
        %447 = vmatprep.subr.bf16.mxu0 0
        %448 = vmatpush1.bf16.msra.mxu0 %v430
        %449 = vmatprep.subr.bf16.mxu0 0
        %450 = vmatpush1.bf16.msra.mxu0 %v431
        %451 = vmatprep.subr.bf16.mxu0 0
        %452 = vmatpush1.bf16.msra.mxu0 %v432
        %453 = vmatprep.subr.bf16.mxu0 0
        %454 = vmatpush1.bf16.msra.mxu0 %v433
        %455 = vmatprep.subr.bf16.mxu0 0
        %456 = vmatpush1.bf16.msra.mxu0 %v434
        %457 = vmatprep.subr.bf16.mxu0 0
        %458 = vmatpush1.bf16.msra.mxu0 %v435
        %459 = vmatprep.subr.bf16.mxu0 0
        %460 = vmatpush1.bf16.msra.mxu0 %v436
        %461 = vmatprep.subr.bf16.mxu0 0
        %462 = vmatpush1.bf16.msra.mxu0 0
        %463 = vmatprep.subr.bf16.mxu0 0
        %464 = vmatpush1.bf16.msra.mxu0 0
        %465 = vmatprep.subr.bf16.mxu0 0
        %466 = vmatpush1.bf16.msra.mxu0 0
        %467 = vmatprep.subr.bf16.mxu0 0
        %468 = vmatpush1.bf16.msra.mxu0 0
        %469 = vmatprep.subr.bf16.mxu0 0
        %470 = vmatpush1.bf16.msra.mxu0 0
        %471 = vmatprep.subr.bf16.mxu0 0
        %472 = vmatpush1.bf16.msra.mxu0 0
        %473 = vmatprep.subr.bf16.mxu0 0
        %474 = vmatpush1.bf16.msra.mxu0 0
        %475 = vmatprep.subr.bf16.mxu0 0
        %476 = vmatpush1.bf16.msra.mxu0 0
        %477 = vmatprep.mubr.bf16.mxu0 0
        %478 = vmatmul.mubr.bf16.gmra.mrb[0].mxu0 %v381
        %v479 = vpop.f32.mrb[0].mxu0
        %v480 = vadd.f32 0.0, %v479
        %v481 = vpop.f32.mrb[0].mxu0
        %v482 = vpop.f32.mrb[0].mxu0
        %v483 = vadd.f32 0.0, %v482
        %v484 = vpop.f32.mrb[0].mxu0
        %485 = vmatprep.mubr.bf16.mxu0 0
        %486 = vmatmul.mubr.bf16.gmra.mrb[0].mxu0 %v382
        %v487 = vpop.f32.mrb[0].mxu0
        %v488 = vadd.f32 0.0, %v487
        %v489 = vpop.f32.mrb[0].mxu0
        %v490 = vpop.f32.mrb[0].mxu0
        %v491 = vadd.f32 0.0, %v490
        %v492 = vpop.f32.mrb[0].mxu0
        %493 = vmatprep.mubr.bf16.mxu0 0
        %494 = vmatmul.mubr.bf16.gmra.mrb[0].mxu0 %v383
        %v495 = vpop.f32.mrb[0].mxu0
        %v496 = vadd.f32 0.0, %v495
        %v497 = vpop.f32.mrb[0].mxu0
        %v498 = vpop.f32.mrb[0].mxu0
        %v499 = vadd.f32 0.0, %v498
        %v500 = vpop.f32.mrb[0].mxu0
        %501 = vmatprep.mubr.bf16.mxu0 0
        %502 = vmatmul.mubr.bf16.gmra.mrb[0].mxu0 %v384
        %v503 = vpop.f32.mrb[0].mxu0
        %v504 = vadd.f32 0.0, %v503
        %v505 = vpop.f32.mrb[0].mxu0
        %v506 = vpop.f32.mrb[0].mxu0
        %v507 = vadd.f32 0.0, %v506
        %v508 = vpop.f32.mrb[0].mxu0
        %509 = vmatprep.mubr.bf16.mxu0 0
        %510 = vmatmul.mubr.bf16.gmra.mrb[0].mxu0 %v385
        %v511 = vpop.f32.mrb[0].mxu0
        %v512 = vadd.f32 0.0, %v511
        %v513 = vpop.f32.mrb[0].mxu0
        %v514 = vpop.f32.mrb[0].mxu0
        %v515 = vadd.f32 0.0, %v514
        %v516 = vpop.f32.mrb[0].mxu0
        %517 = vmatprep.mubr.bf16.mxu0 0
        %518 = vmatmul.mubr.bf16.gmra.mrb[0].mxu0 %v386
        %v519 = vpop.f32.mrb[0].mxu0
        %v520 = vadd.f32 0.0, %v519
        %v521 = vpop.f32.mrb[0].mxu0
        %v522 = vpop.f32.mrb[0].mxu0
        %v523 = vadd.f32 0.0, %v522
        %v524 = vpop.f32.mrb[0].mxu0
        %525 = vmatprep.mubr.bf16.mxu0 0
        %526 = vmatmul.mubr.bf16.gmra.mrb[0].mxu0 %v387
        %v527 = vpop.f32.mrb[0].mxu0
        %v528 = vadd.f32 0.0, %v527
        %v529 = vpop.f32.mrb[0].mxu0
        %v530 = vpop.f32.mrb[0].mxu0
        %v531 = vadd.f32 0.0, %v530
        %v532 = vpop.f32.mrb[0].mxu0
        %533 = vmatprep.mubr.bf16.mxu0 0
        %534 = vmatmul.mubr.bf16.gmra.mrb[0].mxu0 %v388
        %v535 = vpop.f32.mrb[0].mxu0
        %v536 = vadd.f32 0.0, %v535
        %v537 = vpop.f32.mrb[0].mxu0
        %v538 = vpop.f32.mrb[0].mxu0
        %v539 = vadd.f32 0.0, %v538
        %v540 = vpop.f32.mrb[0].mxu0
        %541 = vmatprep.mubr.bf16.mxu0 0
        %542 = vmatmul.mubr.bf16.gmra.mrb[0].mxu0 %v389
        %v543 = vpop.f32.mrb[0].mxu0
        %v544 = vadd.f32 0.0, %v543
        %v545 = vpop.f32.mrb[0].mxu0
        %v546 = vpop.f32.mrb[0].mxu0
        %v547 = vadd.f32 0.0, %v546
        %v548 = vpop.f32.mrb[0].mxu0
        %549 = vmatprep.mubr.bf16.mxu0 0
        %550 = vmatmul.mubr.bf16.gmra.mrb[0].mxu0 %v390
        %v551 = vpop.f32.mrb[0].mxu0
        %v552 = vadd.f32 0.0, %v551
        %v553 = vpop.f32.mrb[0].mxu0
        %v554 = vpop.f32.mrb[0].mxu0
        %v555 = vadd.f32 0.0, %v554
        %v556 = vpop.f32.mrb[0].mxu0
        %557 = vmatprep.mubr.bf16.mxu0 0
        %558 = vmatmul.mubr.bf16.gmra.mrb[0].mxu0 %v391
        %v559 = vpop.f32.mrb[0].mxu0
        %v560 = vadd.f32 0.0, %v559
        %v561 = vpop.f32.mrb[0].mxu0
        %v562 = vpop.f32.mrb[0].mxu0
        %v563 = vadd.f32 0.0, %v562
        %v564 = vpop.f32.mrb[0].mxu0
        %565 = vmatprep.mubr.bf16.mxu0 0
        %566 = vmatmul.mubr.bf16.gmra.mrb[0].mxu0 %v392
        %v567 = vpop.f32.mrb[0].mxu0
        %v568 = vadd.f32 0.0, %v567
        %v569 = vpop.f32.mrb[0].mxu0
        %v570 = vpop.f32.mrb[0].mxu0
        %v571 = vadd.f32 0.0, %v570
        %v572 = vpop.f32.mrb[0].mxu0
        %573 = vmatprep.mubr.bf16.mxu0 0
        %574 = vmatmul.mubr.bf16.gmra.mrb[0].mxu0 %v393
        %v575 = vpop.f32.mrb[0].mxu0
        %v576 = vadd.f32 0.0, %v575
        %v577 = vpop.f32.mrb[0].mxu0
        %v578 = vpop.f32.mrb[0].mxu0
        %v579 = vadd.f32 0.0, %v578
        %v580 = vpop.f32.mrb[0].mxu0
        %581 = vmatprep.mubr.bf16.mxu0 0
        %582 = vmatmul.mubr.bf16.gmra.mrb[0].mxu0 %v394
        %v583 = vpop.f32.mrb[0].mxu0
        %v584 = vadd.f32 0.0, %v583
        %v585 = vpop.f32.mrb[0].mxu0
        %v586 = vpop.f32.mrb[0].mxu0
        %v587 = vadd.f32 0.0, %v586
        %v588 = vpop.f32.mrb[0].mxu0
        %589 = vmatprep.mubr.bf16.mxu0 0
        %590 = vmatmul.mubr.bf16.gmra.mrb[0].mxu0 %v395
        %v591 = vpop.f32.mrb[0].mxu0
        %v592 = vadd.f32 0.0, %v591
        %v593 = vpop.f32.mrb[0].mxu0
        %v594 = vpop.f32.mrb[0].mxu0
        %v595 = vadd.f32 0.0, %v594
        %v596 = vpop.f32.mrb[0].mxu0
        %597 = vmatprep.mubr.bf16.mxu0 0
        %598 = vmatmul.mubr.bf16.gmra.mrb[0].mxu0 %v396
        %v599 = vpop.f32.mrb[0].mxu0
        %v600 = vadd.f32 0.0, %v599
        %v601 = vpop.f32.mrb[0].mxu0
        %v602 = vpop.f32.mrb[0].mxu0
        %v603 = vadd.f32 0.0, %v602
        %v604 = vpop.f32.mrb[0].mxu0
        %605 = vdwg.mxu0
        %s606 = sld [smem:[#allocation2]]
        %v607 = vstv %s606
        %v608 = vrcp.pop %v607
        %s609 = vtos %v608
        %v610 = vstv %s609
        %v611 = vmul.f32 %v480, %v610
        %v612 = vmul.f32 %v483, %v610
        %v613 = vmul.f32 %v488, %v610
        %v614 = vmul.f32 %v491, %v610
        %v615 = vmul.f32 %v496, %v610
        %v616 = vmul.f32 %v499, %v610
        %v617 = vmul.f32 %v504, %v610
        %v618 = vmul.f32 %v507, %v610
        %v619 = vmul.f32 %v512, %v610
        %v620 = vmul.f32 %v515, %v610
        %v621 = vmul.f32 %v520, %v610
        %v622 = vmul.f32 %v523, %v610
        %v623 = vmul.f32 %v528, %v610
        %v624 = vmul.f32 %v531, %v610
        %v625 = vmul.f32 %v536, %v610
        %v626 = vmul.f32 %v539, %v610
        %v627 = vmul.f32 %v544, %v610
        %v628 = vmul.f32 %v547, %v610
        %v629 = vmul.f32 %v552, %v610
        %v630 = vmul.f32 %v555, %v610
        %v631 = vmul.f32 %v560, %v610
        %v632 = vmul.f32 %v563, %v610
        %v633 = vmul.f32 %v568, %v610
        %v634 = vmul.f32 %v571, %v610
        %v635 = vmul.f32 %v576, %v610
        %v636 = vmul.f32 %v579, %v610
        %v637 = vmul.f32 %v584, %v610
        %v638 = vmul.f32 %v587, %v610
        %v639 = vmul.f32 %v592, %v610
        %v640 = vmul.f32 %v595, %v610
        %v641 = vmul.f32 %v600, %v610
        %v642 = vmul.f32 %v603, %v610
        %643 = vmax.xlane.f32.xlu0 %v611
        %v644 = vpop.xlane.xlu0 %643
        %645 = vmax.xlane.f32.xlu0 %v612
        %v646 = vpop.xlane.xlu0 %645
        %647 = vmax.xlane.f32.xlu0 %v613
        %v648 = vpop.xlane.xlu0 %647
        %649 = vmax.xlane.f32.xlu0 %v614
        %v650 = vpop.xlane.xlu0 %649
        %651 = vmax.xlane.f32.xlu0 %v615
        %v652 = vpop.xlane.xlu0 %651
        %653 = vmax.xlane.f32.xlu0 %v616
        %v654 = vpop.xlane.xlu0 %653
        %655 = vmax.xlane.f32.xlu0 %v617
        %v656 = vpop.xlane.xlu0 %655
        %657 = vmax.xlane.f32.xlu0 %v618
        %v658 = vpop.xlane.xlu0 %657
        %659 = vmax.xlane.f32.xlu0 %v619
        %v660 = vpop.xlane.xlu0 %659
        %661 = vmax.xlane.f32.xlu0 %v620
        %v662 = vpop.xlane.xlu0 %661
        %663 = vmax.xlane.f32.xlu0 %v621
        %v664 = vpop.xlane.xlu0 %663
        %665 = vmax.xlane.f32.xlu0 %v622
        %v666 = vpop.xlane.xlu0 %665
        %667 = vmax.xlane.f32.xlu0 %v623
        %v668 = vpop.xlane.xlu0 %667
        %669 = vmax.xlane.f32.xlu0 %v624
        %v670 = vpop.xlane.xlu0 %669
        %671 = vmax.xlane.f32.xlu0 %v625
        %v672 = vpop.xlane.xlu0 %671
        %673 = vmax.xlane.f32.xlu0 %v626
        %v674 = vpop.xlane.xlu0 %673
        %675 = vmax.xlane.f32.xlu0 %v627
        %v676 = vpop.xlane.xlu0 %675
        %677 = vmax.xlane.f32.xlu0 %v628
        %v678 = vpop.xlane.xlu0 %677
        %679 = vmax.xlane.f32.xlu0 %v629
        %v680 = vpop.xlane.xlu0 %679
        %681 = vmax.xlane.f32.xlu0 %v630
        %v682 = vpop.xlane.xlu0 %681
        %683 = vmax.xlane.f32.xlu0 %v631
        %v684 = vpop.xlane.xlu0 %683
        %685 = vmax.xlane.f32.xlu0 %v632
        %v686 = vpop.xlane.xlu0 %685
        %687 = vmax.xlane.f32.xlu0 %v633
        %v688 = vpop.xlane.xlu0 %687
        %689 = vmax.xlane.f32.xlu0 %v634
        %v690 = vpop.xlane.xlu0 %689
        %691 = vmax.xlane.f32.xlu0 %v635
        %v692 = vpop.xlane.xlu0 %691
        %693 = vmax.xlane.f32.xlu0 %v636
        %v694 = vpop.xlane.xlu0 %693
        %695 = vmax.xlane.f32.xlu0 %v637
        %v696 = vpop.xlane.xlu0 %695
        %697 = vmax.xlane.f32.xlu0 %v638
        %v698 = vpop.xlane.xlu0 %697
        %699 = vmax.xlane.f32.xlu0 %v639
        %v700 = vpop.xlane.xlu0 %699
        %701 = vmax.xlane.f32.xlu0 %v640
        %v702 = vpop.xlane.xlu0 %701
        %703 = vmax.xlane.f32.xlu0 %v641
        %v704 = vpop.xlane.xlu0 %703
        %705 = vmax.xlane.f32.xlu0 %v642
        %v706 = vpop.xlane.xlu0 %705
        %v707 = vsub.f32 %v611, %v644
        %v708 = vsub.f32 %v612, %v646
        %v709 = vsub.f32 %v613, %v648
        %v710 = vsub.f32 %v614, %v650
        %v711 = vsub.f32 %v615, %v652
        %v712 = vsub.f32 %v616, %v654
        %v713 = vsub.f32 %v617, %v656
        %v714 = vsub.f32 %v618, %v658
        %v715 = vsub.f32 %v619, %v660
        %v716 = vsub.f32 %v620, %v662
        %v717 = vsub.f32 %v621, %v664
        %v718 = vsub.f32 %v622, %v666
        %v719 = vsub.f32 %v623, %v668
        %v720 = vsub.f32 %v624, %v670
        %v721 = vsub.f32 %v625, %v672
        %v722 = vsub.f32 %v626, %v674
        %v723 = vsub.f32 %v627, %v676
        %v724 = vsub.f32 %v628, %v678
        %v725 = vsub.f32 %v629, %v680
        %v726 = vsub.f32 %v630, %v682
        %v727 = vsub.f32 %v631, %v684
        %v728 = vsub.f32 %v632, %v686
        %v729 = vsub.f32 %v633, %v688
        %v730 = vsub.f32 %v634, %v690
        %v731 = vsub.f32 %v635, %v692
        %v732 = vsub.f32 %v636, %v694
        %v733 = vsub.f32 %v637, %v696
        %v734 = vsub.f32 %v638, %v698
        %v735 = vsub.f32 %v639, %v700
        %v736 = vsub.f32 %v640, %v702
        %v737 = vsub.f32 %v641, %v704
        %v738 = vsub.f32 %v642, %v706
        %v739 = vmul.f32 %v707, 1.442695
        %v740 = vpow.pop %v739
        %v741 = vmul.f32 %v708, 1.442695
        %v742 = vpow.pop %v741
        %v743 = vmul.f32 %v709, 1.442695
        %v744 = vpow.pop %v743
        %v745 = vmul.f32 %v710, 1.442695
        %v746 = vpow.pop %v745
        %v747 = vmul.f32 %v711, 1.442695
        %v748 = vpow.pop %v747
        %v749 = vmul.f32 %v712, 1.442695
        %v750 = vpow.pop %v749
        %v751 = vmul.f32 %v713, 1.442695
        %v752 = vpow.pop %v751
        %v753 = vmul.f32 %v714, 1.442695
        %v754 = vpow.pop %v753
        %v755 = vmul.f32 %v715, 1.442695
        %v756 = vpow.pop %v755
        %v757 = vmul.f32 %v716, 1.442695
        %v758 = vpow.pop %v757
        %v759 = vmul.f32 %v717, 1.442695
        %v760 = vpow.pop %v759
        %v761 = vmul.f32 %v718, 1.442695
        %v762 = vpow.pop %v761
        %v763 = vmul.f32 %v719, 1.442695
        %v764 = vpow.pop %v763
        %v765 = vmul.f32 %v720, 1.442695
        %v766 = vpow.pop %v765
        %v767 = vmul.f32 %v721, 1.442695
        %v768 = vpow.pop %v767
        %v769 = vmul.f32 %v722, 1.442695
        %v770 = vpow.pop %v769
        %v771 = vmul.f32 %v723, 1.442695
        %v772 = vpow.pop %v771
        %v773 = vmul.f32 %v724, 1.442695
        %v774 = vpow.pop %v773
        %v775 = vmul.f32 %v725, 1.442695
        %v776 = vpow.pop %v775
        %v777 = vmul.f32 %v726, 1.442695
        %v778 = vpow.pop %v777
        %v779 = vmul.f32 %v727, 1.442695
        %v780 = vpow.pop %v779
        %v781 = vmul.f32 %v728, 1.442695
        %v782 = vpow.pop %v781
        %v783 = vmul.f32 %v729, 1.442695
        %v784 = vpow.pop %v783
        %v785 = vmul.f32 %v730, 1.442695
        %v786 = vpow.pop %v785
        %v787 = vmul.f32 %v731, 1.442695
        %v788 = vpow.pop %v787
        %v789 = vmul.f32 %v732, 1.442695
        %v790 = vpow.pop %v789
        %v791 = vmul.f32 %v733, 1.442695
        %v792 = vpow.pop %v791
        %v793 = vmul.f32 %v734, 1.442695
        %v794 = vpow.pop %v793
        %v795 = vmul.f32 %v735, 1.442695
        %v796 = vpow.pop %v795
        %v797 = vmul.f32 %v736, 1.442695
        %v798 = vpow.pop %v797
        %v799 = vmul.f32 %v737, 1.442695
        %v800 = vpow.pop %v799
        %v801 = vmul.f32 %v738, 1.442695
        %v802 = vpow.pop %v801
        %803 = vadd.xlane.f32.xlu0 %v740
        %v804 = vpop.xlane.xlu0 %803
        %805 = vadd.xlane.f32.xlu0 %v742
        %v806 = vpop.xlane.xlu0 %805
        %807 = vadd.xlane.f32.xlu0 %v744
        %v808 = vpop.xlane.xlu0 %807
        %809 = vadd.xlane.f32.xlu0 %v746
        %v810 = vpop.xlane.xlu0 %809
        %811 = vadd.xlane.f32.xlu0 %v748
        %v812 = vpop.xlane.xlu0 %811
        %813 = vadd.xlane.f32.xlu0 %v750
        %v814 = vpop.xlane.xlu0 %813
        %815 = vadd.xlane.f32.xlu0 %v752
        %v816 = vpop.xlane.xlu0 %815
        %817 = vadd.xlane.f32.xlu0 %v754
        %v818 = vpop.xlane.xlu0 %817
        %819 = vadd.xlane.f32.xlu0 %v756
        %v820 = vpop.xlane.xlu0 %819
        %821 = vadd.xlane.f32.xlu0 %v758
        %v822 = vpop.xlane.xlu0 %821
        %823 = vadd.xlane.f32.xlu0 %v760
        %v824 = vpop.xlane.xlu0 %823
        %825 = vadd.xlane.f32.xlu0 %v762
        %v826 = vpop.xlane.xlu0 %825
        %827 = vadd.xlane.f32.xlu0 %v764
        %v828 = vpop.xlane.xlu0 %827
        %829 = vadd.xlane.f32.xlu0 %v766
        %v830 = vpop.xlane.xlu0 %829
        %831 = vadd.xlane.f32.xlu0 %v768
        %v832 = vpop.xlane.xlu0 %831
        %833 = vadd.xlane.f32.xlu0 %v770
        %v834 = vpop.xlane.xlu0 %833
        %835 = vadd.xlane.f32.xlu0 %v772
        %v836 = vpop.xlane.xlu0 %835
        %837 = vadd.xlane.f32.xlu0 %v774
        %v838 = vpop.xlane.xlu0 %837
        %839 = vadd.xlane.f32.xlu0 %v776
        %v840 = vpop.xlane.xlu0 %839
        %841 = vadd.xlane.f32.xlu0 %v778
        %v842 = vpop.xlane.xlu0 %841
        %843 = vadd.xlane.f32.xlu0 %v780
        %v844 = vpop.xlane.xlu0 %843
        %845 = vadd.xlane.f32.xlu0 %v782
        %v846 = vpop.xlane.xlu0 %845
        %847 = vadd.xlane.f32.xlu0 %v784
        %v848 = vpop.xlane.xlu0 %847
        %849 = vadd.xlane.f32.xlu0 %v786
        %v850 = vpop.xlane.xlu0 %849
        %851 = vadd.xlane.f32.xlu0 %v788
        %v852 = vpop.xlane.xlu0 %851
        %853 = vadd.xlane.f32.xlu0 %v790
        %v854 = vpop.xlane.xlu0 %853
        %855 = vadd.xlane.f32.xlu0 %v792
        %v856 = vpop.xlane.xlu0 %855
        %857 = vadd.xlane.f32.xlu0 %v794
        %v858 = vpop.xlane.xlu0 %857
        %859 = vadd.xlane.f32.xlu0 %v796
        %v860 = vpop.xlane.xlu0 %859
        %861 = vadd.xlane.f32.xlu0 %v798
        %v862 = vpop.xlane.xlu0 %861
        %863 = vadd.xlane.f32.xlu0 %v800
        %v864 = vpop.xlane.xlu0 %863
        %865 = vadd.xlane.f32.xlu0 %v802
        %v866 = vpop.xlane.xlu0 %865
        %v867 = vrcp.pop %v804
        %v868 = vmul.f32 1.0, %v867
        %v869 = vrcp.pop %v806
        %v870 = vmul.f32 1.0, %v869
        %v871 = vrcp.pop %v808
        %v872 = vmul.f32 1.0, %v871
        %v873 = vrcp.pop %v810
        %v874 = vmul.f32 1.0, %v873
        %v875 = vrcp.pop %v812
        %v876 = vmul.f32 1.0, %v875
        %v877 = vrcp.pop %v814
        %v878 = vmul.f32 1.0, %v877
        %v879 = vrcp.pop %v816
        %v880 = vmul.f32 1.0, %v879
        %v881 = vrcp.pop %v818
        %v882 = vmul.f32 1.0, %v881
        %v883 = vrcp.pop %v820
        %v884 = vmul.f32 1.0, %v883
        %v885 = vrcp.pop %v822
        %v886 = vmul.f32 1.0, %v885
        %v887 = vrcp.pop %v824
        %v888 = vmul.f32 1.0, %v887
        %v889 = vrcp.pop %v826
        %v890 = vmul.f32 1.0, %v889
        %v891 = vrcp.pop %v828
        %v892 = vmul.f32 1.0, %v891
        %v893 = vrcp.pop %v830
        %v894 = vmul.f32 1.0, %v893
        %v895 = vrcp.pop %v832
        %v896 = vmul.f32 1.0, %v895
        %v897 = vrcp.pop %v834
        %v898 = vmul.f32 1.0, %v897
        %v899 = vrcp.pop %v836
        %v900 = vmul.f32 1.0, %v899
        %v901 = vrcp.pop %v838
        %v902 = vmul.f32 1.0, %v901
        %v903 = vrcp.pop %v840
        %v904 = vmul.f32 1.0, %v903
        %v905 = vrcp.pop %v842
        %v906 = vmul.f32 1.0, %v905
        %v907 = vrcp.pop %v844
        %v908 = vmul.f32 1.0, %v907
        %v909 = vrcp.pop %v846
        %v910 = vmul.f32 1.0, %v909
        %v911 = vrcp.pop %v848
        %v912 = vmul.f32 1.0, %v911
        %v913 = vrcp.pop %v850
        %v914 = vmul.f32 1.0, %v913
        %v915 = vrcp.pop %v852
        %v916 = vmul.f32 1.0, %v915
        %v917 = vrcp.pop %v854
        %v918 = vmul.f32 1.0, %v917
        %v919 = vrcp.pop %v856
        %v920 = vmul.f32 1.0, %v919
        %v921 = vrcp.pop %v858
        %v922 = vmul.f32 1.0, %v921
        %v923 = vrcp.pop %v860
        %v924 = vmul.f32 1.0, %v923
        %v925 = vrcp.pop %v862
        %v926 = vmul.f32 1.0, %v925
        %v927 = vrcp.pop %v864
        %v928 = vmul.f32 1.0, %v927
        %v929 = vrcp.pop %v866
        %v930 = vmul.f32 1.0, %v929
        %v931 = vmul.f32 %v740, %v868
        %v932 = vmul.f32 %v742, %v870
        %v933 = vmul.f32 %v744, %v872
        %v934 = vmul.f32 %v746, %v874
        %v935 = vmul.f32 %v748, %v876
        %v936 = vmul.f32 %v750, %v878
        %v937 = vmul.f32 %v752, %v880
        %v938 = vmul.f32 %v754, %v882
        %v939 = vmul.f32 %v756, %v884
        %v940 = vmul.f32 %v758, %v886
        %v941 = vmul.f32 %v760, %v888
        %v942 = vmul.f32 %v762, %v890
        %v943 = vmul.f32 %v764, %v892
        %v944 = vmul.f32 %v766, %v894
        %v945 = vmul.f32 %v768, %v896
        %v946 = vmul.f32 %v770, %v898
        %v947 = vmul.f32 %v772, %v900
        %v948 = vmul.f32 %v774, %v902
        %v949 = vmul.f32 %v776, %v904
        %v950 = vmul.f32 %v778, %v906
        %v951 = vmul.f32 %v780, %v908
        %v952 = vmul.f32 %v782, %v910
        %v953 = vmul.f32 %v784, %v912
        %v954 = vmul.f32 %v786, %v914
        %v955 = vmul.f32 %v788, %v916
        %v956 = vmul.f32 %v790, %v918
        %v957 = vmul.f32 %v792, %v920
        %v958 = vmul.f32 %v794, %v922
        %v959 = vmul.f32 %v796, %v924
        %v960 = vmul.f32 %v798, %v926
        %v961 = vmul.f32 %v800, %v928
        %v962 = vmul.f32 %v802, %v930
        %v963 = vld [vmem:[%s281] sm:$0xf]
        %v964 = vld [vmem:[%s281 + $0x4] sm:$0xf]
        %v965 = vld [vmem:[%s281 + $0x8] sm:$0xf]
        %v966 = vld [vmem:[%s281 + $0xc] sm:$0xf]
        %v967 = vld [vmem:[%s281 + $0x10] sm:$0xf]
        %v968 = vld [vmem:[%s281 + $0x14] sm:$0xf]
        %v969 = vld [vmem:[%s281 + $0x18] sm:$0xf]
        %v970 = vld [vmem:[%s281 + $0x1c] sm:$0xf]
        %v971 = vld [vmem:[%s281 + $0x20] sm:$0xf]
        %v972 = vld [vmem:[%s281 + $0x24] sm:$0xf]
        %v973 = vld [vmem:[%s281 + $0x28] sm:$0xf]
        %v974 = vld [vmem:[%s281 + $0x2c] sm:$0xf]
        %v975 = vld [vmem:[%s281 + $0x30] sm:$0xf]
        %v976 = vld [vmem:[%s281 + $0x34] sm:$0xf]
        %v977 = vld [vmem:[%s281 + $0x38] sm:$0xf]
        %v978 = vld [vmem:[%s281 + $0x3c] sm:$0xf]
        %v979 = vld [vmem:[%s281 + $0x40] sm:$0xf]
        %v980 = vld [vmem:[%s281 + $0x44] sm:$0xf]
        %v981 = vld [vmem:[%s281 + $0x48] sm:$0xf]
        %v982 = vld [vmem:[%s281 + $0x4c] sm:$0xf]
        %v983 = vld [vmem:[%s281 + $0x50] sm:$0xf]
        %v984 = vld [vmem:[%s281 + $0x54] sm:$0xf]
        %v985 = vld [vmem:[%s281 + $0x58] sm:$0xf]
        %v986 = vld [vmem:[%s281 + $0x5c] sm:$0xf]
        %v987 = vld [vmem:[%s281 + $0x60] sm:$0xf]
        %v988 = vld [vmem:[%s281 + $0x64] sm:$0xf]
        %v989 = vld [vmem:[%s281 + $0x68] sm:$0xf]
        %v990 = vld [vmem:[%s281 + $0x6c] sm:$0xf]
        %v991 = vld [vmem:[%s281 + $0x70] sm:$0xf]
        %v992 = vld [vmem:[%s281 + $0x74] sm:$0xf]
        %v993 = vld [vmem:[%s281 + $0x78] sm:$0xf]
        %v994 = vld [vmem:[%s281 + $0x7c] sm:$0xf]
        %v995 = vunpack.c.l.bf16 %v963
        %v996 = vunpack.c.l.bf16 %v964
        %v997 = vunpack.c.l.bf16 %v965
        %v998 = vunpack.c.l.bf16 %v966
        %v999 = vunpack.c.l.bf16 %v967
        %v1000 = vunpack.c.l.bf16 %v968
        %v1001 = vunpack.c.l.bf16 %v969
        %v1002 = vunpack.c.l.bf16 %v970
        %v1003 = vunpack.c.l.bf16 %v971
        %v1004 = vunpack.c.l.bf16 %v972
        %v1005 = vunpack.c.l.bf16 %v973
        %v1006 = vunpack.c.l.bf16 %v974
        %v1007 = vunpack.c.l.bf16 %v975
        %v1008 = vunpack.c.l.bf16 %v976
        %v1009 = vunpack.c.l.bf16 %v977
        %v1010 = vunpack.c.l.bf16 %v978
        %v1011 = vunpack.c.l.bf16 %v979
        %v1012 = vunpack.c.l.bf16 %v980
        %v1013 = vunpack.c.l.bf16 %v981
        %v1014 = vunpack.c.l.bf16 %v982
        %v1015 = vunpack.c.l.bf16 %v983
        %v1016 = vunpack.c.l.bf16 %v984
        %v1017 = vunpack.c.l.bf16 %v985
        %v1018 = vunpack.c.l.bf16 %v986
        %v1019 = vunpack.c.l.bf16 %v987
        %v1020 = vunpack.c.l.bf16 %v988
        %v1021 = vunpack.c.l.bf16 %v989
        %v1022 = vunpack.c.l.bf16 %v990
        %v1023 = vunpack.c.l.bf16 %v991
        %v1024 = vunpack.c.l.bf16 %v992
        %v1025 = vunpack.c.l.bf16 %v993
        %v1026 = vunpack.c.l.bf16 %v994
        %v1027 = vmul.f32 %v931, %v995
        %v1028 = vmul.f32 %v932, %v996
        %v1029 = vmul.f32 %v933, %v997
        %v1030 = vmul.f32 %v934, %v998
        %v1031 = vmul.f32 %v935, %v999
        %v1032 = vmul.f32 %v936, %v1000
        %v1033 = vmul.f32 %v937, %v1001
        %v1034 = vmul.f32 %v938, %v1002
        %v1035 = vmul.f32 %v939, %v1003
        %v1036 = vmul.f32 %v940, %v1004
        %v1037 = vmul.f32 %v941, %v1005
        %v1038 = vmul.f32 %v942, %v1006
        %v1039 = vmul.f32 %v943, %v1007
        %v1040 = vmul.f32 %v944, %v1008
        %v1041 = vmul.f32 %v945, %v1009
        %v1042 = vmul.f32 %v946, %v1010
        %v1043 = vmul.f32 %v947, %v1011
        %v1044 = vmul.f32 %v948, %v1012
        %v1045 = vmul.f32 %v949, %v1013
        %v1046 = vmul.f32 %v950, %v1014
        %v1047 = vmul.f32 %v951, %v1015
        %v1048 = vmul.f32 %v952, %v1016
        %v1049 = vmul.f32 %v953, %v1017
        %v1050 = vmul.f32 %v954, %v1018
        %v1051 = vmul.f32 %v955, %v1019
        %v1052 = vmul.f32 %v956, %v1020
        %v1053 = vmul.f32 %v957, %v1021
        %v1054 = vmul.f32 %v958, %v1022
        %v1055 = vmul.f32 %v959, %v1023
        %v1056 = vmul.f32 %v960, %v1024
        %v1057 = vmul.f32 %v961, %v1025
        %v1058 = vmul.f32 %v962, %v1026
        %v1059 = vpack.c.bf16 %v1028, %v1027
        %v1060 = vpack.c.bf16 %v1030, %v1029
        %v1061 = vpack.c.bf16 %v1032, %v1031
        %v1062 = vpack.c.bf16 %v1034, %v1033
        %v1063 = vpack.c.bf16 %v1036, %v1035
        %v1064 = vpack.c.bf16 %v1038, %v1037
        %v1065 = vpack.c.bf16 %v1040, %v1039
        %v1066 = vpack.c.bf16 %v1042, %v1041
        %v1067 = vpack.c.bf16 %v1044, %v1043
        %v1068 = vpack.c.bf16 %v1046, %v1045
        %v1069 = vpack.c.bf16 %v1048, %v1047
        %v1070 = vpack.c.bf16 %v1050, %v1049
        %v1071 = vpack.c.bf16 %v1052, %v1051
        %v1072 = vpack.c.bf16 %v1054, %v1053
        %v1073 = vpack.c.bf16 %v1056, %v1055
        %v1074 = vpack.c.bf16 %v1058, %v1057
        %v1091 = vunpack.c.l.b16 %v365
        %v1092 = vunpack.c.l.b16 %v366
        %v1093 = vunpack.c.l.b16 %v367
        %v1094 = vunpack.c.l.b16 %v368
        %v1095 = vunpack.c.l.b16 %v369
        %v1096 = vunpack.c.l.b16 %v370
        %v1097 = vunpack.c.l.b16 %v371
        %v1098 = vunpack.c.l.b16 %v372
        %v1099 = vunpack.c.l.b16 %v373
        %v1100 = vunpack.c.l.b16 %v374
        %v1101 = vunpack.c.l.b16 %v375
        %v1102 = vunpack.c.l.b16 %v376
        %v1103 = vunpack.c.l.b16 %v377
        %v1104 = vunpack.c.l.b16 %v378
        %v1105 = vunpack.c.l.b16 %v379
        %v1106 = vunpack.c.l.b16 %v380
        %v1107 = vpack.c.b16 %v1092, %v1091
        %v1108 = vpack.c.b16 %v1094, %v1093
        %v1109 = vpack.c.b16 %v1096, %v1095
        %v1110 = vpack.c.b16 %v1098, %v1097
        %v1111 = vpack.c.b16 %v1100, %v1099
        %v1112 = vpack.c.b16 %v1102, %v1101
        %v1113 = vpack.c.b16 %v1104, %v1103
        %v1114 = vpack.c.b16 %v1106, %v1105
        %1123 = vmatprep.subr.bf16.mxu0 0
        %1124 = vmatpush1.bf16.msra.mxu0 %v1107
        %1125 = vmatprep.subr.bf16.mxu0 0
        %1126 = vmatpush1.bf16.msra.mxu0 %v1108
        %1127 = vmatprep.subr.bf16.mxu0 0
        %1128 = vmatpush1.bf16.msra.mxu0 %v1109
        %1129 = vmatprep.subr.bf16.mxu0 0
        %1130 = vmatpush1.bf16.msra.mxu0 %v1110
        %1131 = vmatprep.subr.bf16.mxu0 0
        %1132 = vmatpush1.bf16.msra.mxu0 %v1111
        %1133 = vmatprep.subr.bf16.mxu0 0
        %1134 = vmatpush1.bf16.msra.mxu0 %v1112
        %1135 = vmatprep.subr.bf16.mxu0 0
        %1136 = vmatpush1.bf16.msra.mxu0 %v1113
        %1137 = vmatprep.subr.bf16.mxu0 0
        %1138 = vmatpush1.bf16.msra.mxu0 %v1114
        %1139 = vmatprep.subr.bf16.mxu0 0
        %1140 = vmatpush1.bf16.msra.mxu0 0
        %1141 = vmatprep.subr.bf16.mxu0 0
        %1142 = vmatpush1.bf16.msra.mxu0 0
        %1143 = vmatprep.subr.bf16.mxu0 0
        %1144 = vmatpush1.bf16.msra.mxu0 0
        %1145 = vmatprep.subr.bf16.mxu0 0
        %1146 = vmatpush1.bf16.msra.mxu0 0
        %1147 = vmatprep.subr.bf16.mxu0 0
        %1148 = vmatpush1.bf16.msra.mxu0 0
        %1149 = vmatprep.subr.bf16.mxu0 0
        %1150 = vmatpush1.bf16.msra.mxu0 0
        %1151 = vmatprep.subr.bf16.mxu0 0
        %1152 = vmatpush1.bf16.msra.mxu0 0
        %1153 = vmatprep.subr.bf16.mxu0 0
        %1154 = vmatpush1.bf16.msra.mxu0 0
        %1155 = vmatprep.mubr.bf16.mxu0 0
        %1156 = vmatmul.mubr.bf16.gmra.mrb[0].mxu0 %v1059
        %v1157 = vpop.f32.mrb[0].mxu0
        %v1158 = vadd.f32 0.0, %v1157
        %v1159 = vpop.f32.mrb[0].mxu0
        %v1160 = vpop.f32.mrb[0].mxu0
        %v1161 = vadd.f32 0.0, %v1160
        %v1162 = vpop.f32.mrb[0].mxu0
        %1163 = vmatprep.mubr.bf16.mxu0 0
        %1164 = vmatmul.mubr.bf16.gmra.mrb[0].mxu0 %v1060
        %v1165 = vpop.f32.mrb[0].mxu0
        %v1166 = vadd.f32 0.0, %v1165
        %v1167 = vpop.f32.mrb[0].mxu0
        %v1168 = vpop.f32.mrb[0].mxu0
        %v1169 = vadd.f32 0.0, %v1168
        %v1170 = vpop.f32.mrb[0].mxu0
        %1171 = vmatprep.mubr.bf16.mxu0 0
        %1172 = vmatmul.mubr.bf16.gmra.mrb[0].mxu0 %v1061
        %v1173 = vpop.f32.mrb[0].mxu0
        %v1174 = vadd.f32 0.0, %v1173
        %v1175 = vpop.f32.mrb[0].mxu0
        %v1176 = vpop.f32.mrb[0].mxu0
        %v1177 = vadd.f32 0.0, %v1176
        %v1178 = vpop.f32.mrb[0].mxu0
        %1179 = vmatprep.mubr.bf16.mxu0 0
        %1180 = vmatmul.mubr.bf16.gmra.mrb[0].mxu0 %v1062
        %v1181 = vpop.f32.mrb[0].mxu0
        %v1182 = vadd.f32 0.0, %v1181
        %v1183 = vpop.f32.mrb[0].mxu0
        %v1184 = vpop.f32.mrb[0].mxu0
        %v1185 = vadd.f32 0.0, %v1184
        %v1186 = vpop.f32.mrb[0].mxu0
        %1187 = vmatprep.mubr.bf16.mxu0 0
        %1188 = vmatmul.mubr.bf16.gmra.mrb[0].mxu0 %v1063
        %v1189 = vpop.f32.mrb[0].mxu0
        %v1190 = vadd.f32 0.0, %v1189
        %v1191 = vpop.f32.mrb[0].mxu0
        %v1192 = vpop.f32.mrb[0].mxu0
        %v1193 = vadd.f32 0.0, %v1192
        %v1194 = vpop.f32.mrb[0].mxu0
        %1195 = vmatprep.mubr.bf16.mxu0 0
        %1196 = vmatmul.mubr.bf16.gmra.mrb[0].mxu0 %v1064
        %v1197 = vpop.f32.mrb[0].mxu0
        %v1198 = vadd.f32 0.0, %v1197
        %v1199 = vpop.f32.mrb[0].mxu0
        %v1200 = vpop.f32.mrb[0].mxu0
        %v1201 = vadd.f32 0.0, %v1200
        %v1202 = vpop.f32.mrb[0].mxu0
        %1203 = vmatprep.mubr.bf16.mxu0 0
        %1204 = vmatmul.mubr.bf16.gmra.mrb[0].mxu0 %v1065
        %v1205 = vpop.f32.mrb[0].mxu0
        %v1206 = vadd.f32 0.0, %v1205
        %v1207 = vpop.f32.mrb[0].mxu0
        %v1208 = vpop.f32.mrb[0].mxu0
        %v1209 = vadd.f32 0.0, %v1208
        %v1210 = vpop.f32.mrb[0].mxu0
        %1211 = vmatprep.mubr.bf16.mxu0 0
        %1212 = vmatmul.mubr.bf16.gmra.mrb[0].mxu0 %v1066
        %v1213 = vpop.f32.mrb[0].mxu0
        %v1214 = vadd.f32 0.0, %v1213
        %v1215 = vpop.f32.mrb[0].mxu0
        %v1216 = vpop.f32.mrb[0].mxu0
        %v1217 = vadd.f32 0.0, %v1216
        %v1218 = vpop.f32.mrb[0].mxu0
        %1219 = vmatprep.mubr.bf16.mxu0 0
        %1220 = vmatmul.mubr.bf16.gmra.mrb[0].mxu0 %v1067
        %v1221 = vpop.f32.mrb[0].mxu0
        %v1222 = vadd.f32 0.0, %v1221
        %v1223 = vpop.f32.mrb[0].mxu0
        %v1224 = vpop.f32.mrb[0].mxu0
        %v1225 = vadd.f32 0.0, %v1224
        %v1226 = vpop.f32.mrb[0].mxu0
        %1227 = vmatprep.mubr.bf16.mxu0 0
        %1228 = vmatmul.mubr.bf16.gmra.mrb[0].mxu0 %v1068
        %v1229 = vpop.f32.mrb[0].mxu0
        %v1230 = vadd.f32 0.0, %v1229
        %v1231 = vpop.f32.mrb[0].mxu0
        %v1232 = vpop.f32.mrb[0].mxu0
        %v1233 = vadd.f32 0.0, %v1232
        %v1234 = vpop.f32.mrb[0].mxu0
        %1235 = vmatprep.mubr.bf16.mxu0 0
        %1236 = vmatmul.mubr.bf16.gmra.mrb[0].mxu0 %v1069
        %v1237 = vpop.f32.mrb[0].mxu0
        %v1238 = vadd.f32 0.0, %v1237
        %v1239 = vpop.f32.mrb[0].mxu0
        %v1240 = vpop.f32.mrb[0].mxu0
        %v1241 = vadd.f32 0.0, %v1240
        %v1242 = vpop.f32.mrb[0].mxu0
        %1243 = vmatprep.mubr.bf16.mxu0 0
        %1244 = vmatmul.mubr.bf16.gmra.mrb[0].mxu0 %v1070
        %v1245 = vpop.f32.mrb[0].mxu0
        %v1246 = vadd.f32 0.0, %v1245
        %v1247 = vpop.f32.mrb[0].mxu0
        %v1248 = vpop.f32.mrb[0].mxu0
        %v1249 = vadd.f32 0.0, %v1248
        %v1250 = vpop.f32.mrb[0].mxu0
        %1251 = vmatprep.mubr.bf16.mxu0 0
        %1252 = vmatmul.mubr.bf16.gmra.mrb[0].mxu0 %v1071
        %v1253 = vpop.f32.mrb[0].mxu0
        %v1254 = vadd.f32 0.0, %v1253
        %v1255 = vpop.f32.mrb[0].mxu0
        %v1256 = vpop.f32.mrb[0].mxu0
        %v1257 = vadd.f32 0.0, %v1256
        %v1258 = vpop.f32.mrb[0].mxu0
        %1259 = vmatprep.mubr.bf16.mxu0 0
        %1260 = vmatmul.mubr.bf16.gmra.mrb[0].mxu0 %v1072
        %v1261 = vpop.f32.mrb[0].mxu0
        %v1262 = vadd.f32 0.0, %v1261
        %v1263 = vpop.f32.mrb[0].mxu0
        %v1264 = vpop.f32.mrb[0].mxu0
        %v1265 = vadd.f32 0.0, %v1264
        %v1266 = vpop.f32.mrb[0].mxu0
        %1267 = vmatprep.mubr.bf16.mxu0 0
        %1268 = vmatmul.mubr.bf16.gmra.mrb[0].mxu0 %v1073
        %v1269 = vpop.f32.mrb[0].mxu0
        %v1270 = vadd.f32 0.0, %v1269
        %v1271 = vpop.f32.mrb[0].mxu0
        %v1272 = vpop.f32.mrb[0].mxu0
        %v1273 = vadd.f32 0.0, %v1272
        %v1274 = vpop.f32.mrb[0].mxu0
        %1275 = vmatprep.mubr.bf16.mxu0 0
        %1276 = vmatmul.mubr.bf16.gmra.mrb[0].mxu0 %v1074
        %v1277 = vpop.f32.mrb[0].mxu0
        %v1278 = vadd.f32 0.0, %v1277
        %v1279 = vpop.f32.mrb[0].mxu0
        %v1280 = vpop.f32.mrb[0].mxu0
        %v1281 = vadd.f32 0.0, %v1280
        %v1282 = vpop.f32.mrb[0].mxu0
        %1283 = vdwg.mxu0
        %1284 = vst [vmem:[%s312] sm:$0xff] %v1158
        %1285 = vst [vmem:[%s312 + $0x8] sm:$0xff] %v1161
        %1286 = vst [vmem:[%s312 + $0x10] sm:$0xff] %v1166
        %1287 = vst [vmem:[%s312 + $0x18] sm:$0xff] %v1169
        %1288 = vst [vmem:[%s312 + $0x20] sm:$0xff] %v1174
        %1289 = vst [vmem:[%s312 + $0x28] sm:$0xff] %v1177
        %1290 = vst [vmem:[%s312 + $0x30] sm:$0xff] %v1182
        %1291 = vst [vmem:[%s312 + $0x38] sm:$0xff] %v1185
        %1292 = vst [vmem:[%s312 + $0x40] sm:$0xff] %v1190
        %1293 = vst [vmem:[%s312 + $0x48] sm:$0xff] %v1193
        %1294 = vst [vmem:[%s312 + $0x50] sm:$0xff] %v1198
        %1295 = vst [vmem:[%s312 + $0x58] sm:$0xff] %v1201
        %1296 = vst [vmem:[%s312 + $0x60] sm:$0xff] %v1206
        %1297 = vst [vmem:[%s312 + $0x68] sm:$0xff] %v1209
        %1298 = vst [vmem:[%s312 + $0x70] sm:$0xff] %v1214
        %1299 = vst [vmem:[%s312 + $0x78] sm:$0xff] %v1217
        %1300 = vst [vmem:[%s312 + $0x80] sm:$0xff] %v1222
        %1301 = vst [vmem:[%s312 + $0x88] sm:$0xff] %v1225
        %1302 = vst [vmem:[%s312 + $0x90] sm:$0xff] %v1230
        %1303 = vst [vmem:[%s312 + $0x98] sm:$0xff] %v1233
        %1304 = vst [vmem:[%s312 + $0xa0] sm:$0xff] %v1238
        %1305 = vst [vmem:[%s312 + $0xa8] sm:$0xff] %v1241
        %1306 = vst [vmem:[%s312 + $0xb0] sm:$0xff] %v1246
        %1307 = vst [vmem:[%s312 + $0xb8] sm:$0xff] %v1249
        %1308 = vst [vmem:[%s312 + $0xc0] sm:$0xff] %v1254
        %1309 = vst [vmem:[%s312 + $0xc8] sm:$0xff] %v1257
        %1310 = vst [vmem:[%s312 + $0xd0] sm:$0xff] %v1262
        %1311 = vst [vmem:[%s312 + $0xd8] sm:$0xff] %v1265
        %1312 = vst [vmem:[%s312 + $0xe0] sm:$0xff] %v1270
        %1313 = vst [vmem:[%s312 + $0xe8] sm:$0xff] %v1273
        %1314 = vst [vmem:[%s312 + $0xf0] sm:$0xff] %v1278
        %1315 = vst [vmem:[%s312 + $0xf8] sm:$0xff] %v1281
        %s1316 = sand.u32 %s150, 1
        %s1317 = scalar_lea.sflag [#allocation5], %s1316
        %s1318 = sand.u32 %s150, 1
        %s1319 = smul.addr %s1318, 256
        %s1320 = scalar_lea.vmem [#allocation11], %s1319
        // Predicated region
        $region57: #{tpu_custom_call.1} parent=39 // pred_check
          %p1321 = pneg %p160
        $region58: #{tpu_custom_call.1} parent=39 // pred_check_branch
          %1323 = sbr.rel (%p1321) target = $region60
        $region59: #{tpu_custom_call.1} parent=39 // pred_region
          %s1324 = smul.u32 32, %s27
          %s1326 = ssub.s32 4096, 4096
          %1327 = vsyncadd %s1317, %s1326
          %s1328 = smul.addr %s1324, 128
          %s1329 = scalar_lea.hbm %s5, %s1328
          %s1330 = sshll.u32 %s1320, 4
          %s1331 = int_to_ptr.vmem [resolvable:$true] %s1330
          %1336 = dma.vmem_to_hbm [thread:$0]  %s1331, 4096, %s1329, %s1317, 128, 128, 8
        $region60: #{tpu_custom_call.1} parent=39 // pred_fallthru
          _
      $region40: #{tpu_custom_call.1} parent=5 // pred_fallthru
        _
      %p1337 = scmp.le.s32.totalorder 2, %s22
      // Predicated region
      $region61: #{tpu_custom_call.1} parent=5 // pred_check
        %p1338 = pneg %p1337
      $region62: #{tpu_custom_call.1} parent=5 // pred_check_branch
        %1340 = sbr.rel (%p1338) target = $region64
      $region63: #{tpu_custom_call.1} parent=5 // pred_region
        %s1341 = ssub.s32 %s22, 2
        // Predicated region
        $region65: #{tpu_custom_call.1} parent=63 // pred_check
          %p1342 = pneg %p166
        $region66: #{tpu_custom_call.1} parent=63 // pred_check_branch
          %1344 = sbr.rel (%p1342) target = $region68
        $region67: #{tpu_custom_call.1} parent=63 // pred_region
          %s1345 = sand.u32 %s151, 1
          %s1346 = scalar_lea.sflag [#allocation5], %s1345
          %s1347 = sand.u32 %s151, 1
          %s1348 = smul.addr %s1347, 256
          %s1349 = scalar_lea.vmem [#allocation11], %s1348
          %1350 = dma.done %s1346, 4096
        $region68: #{tpu_custom_call.1} parent=63 // pred_fallthru
          _
      $region64: #{tpu_custom_call.1} parent=5 // pred_fallthru
        _
    $region6: #{tpu_custom_call.1} parent=1 // loop_footer
      %s26 = sadd.s32 1, %s22
    $region7: #{tpu_custom_call.1} parent=1 // loop_footer_branch
      %21 = sbr.rel target = $region3
    $region8: #{tpu_custom_call.1} parent=1 // loop_exit
      _
    %1351 = vsyncpa [#allocation4], 1
    %s1352 = scalar_lea.sflag [#allocation4], 1
    %1353 = vsyncpa %s1352, 1
    %1354 = vsyncpa [#allocation7], 1
    %1355 = vsyncpa [#allocation10], 1
    %s1356 = scalar_lea.sflag [#allocation10], 1
    %1357 = vsyncpa %s1356, 1
    %1358 = vsyncpa [#allocation5], 1
    %s1359 = scalar_lea.sflag [#allocation5], 1
    %1360 = vsyncpa %s1359, 1

</llo_original>
